<compile_context>
chip_gen: v7x
topology: tpu7x:2x2x1
jax: 0.10.0
libtpu: 0.0.40
codegen_flags: <defaults>
</compile_context>

<pallas_src>
import jax
import jax.numpy as jnp
from jax.experimental import pallas as pl
from jax.experimental.pallas import tpu as pltpu

H = 128  # fc1 output width (fixed by the module definition)


def _round_up(n, m):
    return ((n + m - 1) // m) * m


def _mlp_kernel(x_ref, w1_ref, b1_ref, w2_ref, b2_ref, o_ref):
    # fc1: [TB, D] @ [D, 128] + [1, 128]  (MXU, f32 accumulate)
    h = jnp.dot(x_ref[...], w1_ref[...], preferred_element_type=jnp.float32)
    h = h + b1_ref[...]
    # dropout (eval mode) = identity, then ReLU (VPU)
    h = jnp.maximum(h, 0.0)
    # fc3 has a single output column: VPU multiply + XLU lane reduction instead
    # of an N=1 MXU matmul (saves an MXU push + result-FIFO drain per tile).
    z = jnp.sum(h * w2_ref[...], axis=-1, keepdims=True) + b2_ref[...]
    # numerically-stable sigmoid: exp goes to the (otherwise idle) EUP slot.
    e = jnp.exp(-jnp.abs(z))
    sig = jnp.where(z >= 0, 1.0, e) / (1.0 + e)
    o_ref[...] = sig.astype(o_ref.dtype)


def binary_classifier_forward(x, w1, b1, w2, b2, *, tile_b=None):
    """Fused forward pass.

    x: [B, D] f32; w1: [D, 128]; b1: [128]; w2: [128, 1]; b2: [1] -> [B, 1].
    """
    B, D = x.shape
    assert w1.shape == (D, H) and b1.shape == (H,)
    assert w2.shape == (H, 1) and b2.shape == (1,)

    # Large batch tile (amortizes per-grid-step overhead), rounded to the
    # 8-sublane granule, never bigger than the (rounded) batch itself.
    if tile_b is None:
        tile_b = min(2048, _round_up(B, 8))
    tile_b = _round_up(int(tile_b), 8)
    b_pad = _round_up(B, tile_b)
    if b_pad != B:
        x = jnp.pad(x, ((0, b_pad - B), (0, 0)))

    b1_2d = b1.reshape(1, H)
    w2_row = w2.reshape(1, H)   # [128, 1] -> [1, 128] for the lane reduction
    b2_2d = b2.reshape(1, 1)

    grid = (b_pad // tile_b,)

    # VMEM budget: double-buffered x/out tiles + resident weights + fc1
    # intermediate, with 2x headroom; keep under v7x's 64 MiB physical VMEM.
    vmem_bytes = 4 * (2 * tile_b * D + 2 * tile_b + 2 * D * H + 4 * H + 2
                      + 2 * tile_b * H)
    vmem_bytes = int(min(max(2 * vmem_bytes, 16 * 1024 * 1024),
                         48 * 1024 * 1024))

    out = pl.pallas_call(
        _mlp_kernel,
        out_shape=jax.ShapeDtypeStruct((b_pad, 1), jnp.float32),
        grid=grid,
        in_specs=[
            pl.BlockSpec((tile_b, D), lambda i: (i, 0)),   # x: tiled over batch
            pl.BlockSpec((D, H), lambda i: (0, 0)),        # w1: resident
            pl.BlockSpec((1, H), lambda i: (0, 0)),        # b1: resident
            pl.BlockSpec((1, H), lambda i: (0, 0)),        # w2 (row): resident
            pl.BlockSpec((1, 1), lambda i: (0, 0)),        # b2: resident
        ],
        out_specs=pl.BlockSpec((tile_b, 1), lambda i: (i, 0)),
        compiler_params=pltpu.CompilerParams(
            dimension_semantics=("parallel",),
            vmem_limit_bytes=vmem_bytes,
        ),
    )(x, w1, b1_2d, w2_row, b2_2d)

    return out[:B]


def _reference_forward(x, w1, b1, w2, b2):
    h = jnp.maximum(x @ w1 + b1, 0.0)
    return jax.nn.sigmoid(h @ w2 + b2)


if __name__ == "__main__":
    key = jax.random.PRNGKey(0)
    B = 20                      # batch (not a tile multiple -> exercises padding)
    D = 32                      # mean_representation_size

    k_x, k_w1, k_b1, k_w2, k_b2 = jax.random.split(key, 5)

    x = jax.random.normal(k_x, (B, D), dtype=jnp.float32)
    # deterministic, PyTorch-Linear-like uniform init (bound = 1/sqrt(fan_in))
    w1 = jax.random.uniform(k_w1, (D, H), jnp.float32, -1.0, 1.0) / jnp.sqrt(D)
    b1 = jax.random.uniform(k_b1, (H,), jnp.float32, -1.0, 1.0) / jnp.sqrt(D)
    w2 = jax.random.uniform(k_w2, (H, 1), jnp.float32, -1.0, 1.0) / jnp.sqrt(H)
    b2 = jax.random.uniform(k_b2, (1,), jnp.float32, -1.0, 1.0) / jnp.sqrt(H)

    # small tile to exercise a multi-step grid + padded tail at test size
    out = binary_classifier_forward(x, w1, b1, w2, b2, tile_b=8)
    out = jax.block_until_ready(out)

    ref = _reference_forward(x, w1, b1, w2, b2)
    assert out.shape == (B, 1), out.shape
    assert jnp.allclose(out, ref, atol=1e-5, rtol=1e-5), "mismatch vs reference"

    print("KERNEL_OK")
</pallas_src>

<mosaic_0001>
module attributes {stable_mosaic.version = 11 : i64} {
  func.func @_mlp_kernel(%arg0: i32, %arg1: memref<8x32xf32, #tpu.memory_space<vmem>>, %arg2: memref<32x128xf32, #tpu.memory_space<vmem>>, %arg3: memref<1x128xf32, #tpu.memory_space<vmem>>, %arg4: memref<1x128xf32, #tpu.memory_space<vmem>>, %arg5: memref<1x1xf32, #tpu.memory_space<vmem>>, %arg6: memref<8x1xf32, #tpu.memory_space<vmem>>) attributes {dimension_semantics = [#tpu.dimension_semantics<parallel>], iteration_bounds = array<i64: 3>, scalar_prefetch = 0 : i64, scratch_operands = 0 : i64, tpu.core_type = #tpu.core_type<tc>, window_params = [{transform_indices = @transform_0, window_bounds = array<i64: 8, 32>}, {pipeline_mode = #tpu.pipeline_mode<synchronous>, transform_indices = @transform_1, window_bounds = array<i64: 32, 128>}, {pipeline_mode = #tpu.pipeline_mode<synchronous>, transform_indices = @transform_2, window_bounds = array<i64: 1, 128>}, {pipeline_mode = #tpu.pipeline_mode<synchronous>, transform_indices = @transform_3, window_bounds = array<i64: 1, 128>}, {pipeline_mode = #tpu.pipeline_mode<synchronous>, transform_indices = @transform_4, window_bounds = array<i64: 1, 1>}, {transform_indices = @transform_5, window_bounds = array<i64: 8, 1>}]} {
    %c0 = arith.constant 0 : index
    %c0_0 = arith.constant 0 : index
    %0 = vector.load %arg1[%c0, %c0_0] : memref<8x32xf32, #tpu.memory_space<vmem>>, vector<8x32xf32>
    %c0_1 = arith.constant 0 : index
    %c0_2 = arith.constant 0 : index
    %1 = vector.load %arg2[%c0_1, %c0_2] : memref<32x128xf32, #tpu.memory_space<vmem>>, vector<32x128xf32>
    %cst = arith.constant dense<0.000000e+00> : vector<8x128xf32>
    %2 = tpu.matmul %0, %1, %cst {dimension_numbers = #tpu.dot_dimension_numbers<[1], [0], [0], [1], [0, 0, 1, 1], [], []>} : vector<8x32xf32>, vector<32x128xf32>, vector<8x128xf32> -> vector<8x128xf32>
    %c0_3 = arith.constant 0 : index
    %c0_4 = arith.constant 0 : index
    %3 = vector.load %arg3[%c0_3, %c0_4] : memref<1x128xf32, #tpu.memory_space<vmem>>, vector<1x128xf32>
    %4 = vector.broadcast %3 : vector<1x128xf32> to vector<8x128xf32>
    %5 = arith.addf %2, %4 : vector<8x128xf32>
    %cst_5 = arith.constant 0.000000e+00 : f32
    %6 = vector.broadcast %cst_5 : f32 to vector<8x128xf32>
    %7 = arith.maximumf %5, %6 : vector<8x128xf32>
    %c0_6 = arith.constant 0 : index
    %c0_7 = arith.constant 0 : index
    %8 = vector.load %arg4[%c0_6, %c0_7] : memref<1x128xf32, #tpu.memory_space<vmem>>, vector<1x128xf32>
    %9 = vector.broadcast %8 : vector<1x128xf32> to vector<8x128xf32>
    %10 = arith.mulf %7, %9 : vector<8x128xf32>
    %cst_8 = arith.constant dense<0.000000e+00> : vector<8xf32>
    %11 = vector.multi_reduction <add>, %10, %cst_8 [1] : vector<8x128xf32> to vector<8xf32>
    %12 = vector.shape_cast %11 : vector<8xf32> to vector<8x1xf32>
    %c0_9 = arith.constant 0 : index
    %c0_10 = arith.constant 0 : index
    %13 = vector.load %arg5[%c0_9, %c0_10] : memref<1x1xf32, #tpu.memory_space<vmem>>, vector<1x1xf32>
    %14 = vector.broadcast %13 : vector<1x1xf32> to vector<8x1xf32>
    %15 = arith.addf %12, %14 : vector<8x1xf32>
    %16 = math.absf %15 : vector<8x1xf32>
    %cst_11 = arith.constant 0.000000e+00 : f32
    %17 = vector.broadcast %cst_11 : f32 to vector<8x1xf32>
    %18 = arith.subf %17, %16 : vector<8x1xf32>
    %19 = math.exp %18 : vector<8x1xf32>
    %cst_12 = arith.constant 0.000000e+00 : f32
    %20 = vector.broadcast %cst_12 : f32 to vector<8x1xf32>
    %21 = arith.cmpf oge, %15, %20 : vector<8x1xf32>
    %cst_13 = arith.constant 1.000000e+00 : f32
    %22 = vector.broadcast %cst_13 : f32 to vector<8x1xf32>
    %23 = arith.select %21, %22, %19 : vector<8x1xi1>, vector<8x1xf32>
    %cst_14 = arith.constant 1.000000e+00 : f32
    %24 = vector.broadcast %cst_14 : f32 to vector<8x1xf32>
    %25 = arith.addf %24, %19 : vector<8x1xf32>
    %26 = arith.divf %23, %25 : vector<8x1xf32>
    %c0_15 = arith.constant 0 : index
    %c0_16 = arith.constant 0 : index
    %27 = vector.load %arg6[%c0_15, %c0_16] : memref<8x1xf32, #tpu.memory_space<vmem>>, vector<8x1xf32>
    tpu.vector_store %arg6[%c0_15, %c0_16], %26 {strides = array<i32>} : memref<8x1xf32, #tpu.memory_space<vmem>>, vector<8x1xf32>,
    return
  }
  func.func @transform_0(%arg0: i32) -> (i32, i32) {
    %c0_i32 = arith.constant 0 : i32
    %c0_i32_0 = arith.constant 0 : i32
    return %arg0, %c0_i32 : i32, i32
  }
  func.func @transform_1(%arg0: i32) -> (i32, i32) {
    %c0_i32 = arith.constant 0 : i32
    %c0_i32_0 = arith.constant 0 : i32
    %c0_i32_1 = arith.constant 0 : i32
    return %c0_i32, %c0_i32_0 : i32, i32
  }
  func.func @transform_2(%arg0: i32) -> (i32, i32) {
    %c0_i32 = arith.constant 0 : i32
    %c0_i32_0 = arith.constant 0 : i32
    %c0_i32_1 = arith.constant 0 : i32
    return %c0_i32, %c0_i32_0 : i32, i32
  }
  func.func @transform_3(%arg0: i32) -> (i32, i32) {
    %c0_i32 = arith.constant 0 : i32
    %c0_i32_0 = arith.constant 0 : i32
    %c0_i32_1 = arith.constant 0 : i32
    return %c0_i32, %c0_i32_0 : i32, i32
  }
  func.func @transform_4(%arg0: i32) -> (i32, i32) {
    %c0_i32 = arith.constant 0 : i32
    %c0_i32_0 = arith.constant 0 : i32
    %c0_i32_1 = arith.constant 0 : i32
    return %c0_i32, %c0_i32_0 : i32, i32
  }
  func.func @transform_5(%arg0: i32) -> (i32, i32) {
    %c0_i32 = arith.constant 0 : i32
    %c0_i32_0 = arith.constant 0 : i32
    return %arg0, %c0_i32 : i32, i32
  }
}

</mosaic_0001>

<llo_original>
// kernel: tpu_custom_call.1
$region0: #{tpu_custom_call.1}
  #allocation0 [shape = 'u32[]', space=smem, size = 0x4, offset = 0x4, fixed_abs, tag = 'smem constant byte address 0x4 - core index']
  #allocation1 [shape = 'u32[144,128]{1,0:T(1,128)}', space=vmem, size = 0x12000, scoped, tag = 'internal scratch']
  #allocation2 [shape = 'f32[1,1]{1,0:T(1,128)S(1)}', space=vmem, size = 0x200, scoped, tag = 'scoped memory for tpu_custom_call.1']
  %s0 = inlined_call_operand.hbm [shape: f32[24,32], index: 0, kind: input, shape index: {}]
  %s1 = inlined_call_operand.hbm [shape: f32[32,128], index: 1, kind: input, shape index: {}]
  %s2 = inlined_call_operand.vmem [shape: f32[1,128], index: 2, kind: input, shape index: {}]
  %s3 = inlined_call_operand.vmem [shape: f32[1,128], index: 3, kind: input, shape index: {}]
  %s4 = inlined_call_operand.<no memory space> [shape: f32[1,1], index: 4, kind: input, shape index: {}]
  %s5 = inlined_call_operand.vmem [shape: f32[24,1], index: 5, kind: output, shape index: {}]
  %s6 = sld [smem:[#allocation0]]
  $region61: #{tpu_custom_call.1} parent=0
    _
  %s8 = ssub.s32 1, %s6
  %s9 = scalar_select 0, %s8, %s6
  %v10 = vstv %s4
  %11 = vst [vmem:[#allocation2] sm:$0x1] %v10
  $region1: #{tpu_custom_call.1} parent=0
    #allocation3 [shape = 'u8[8192]{0}', space=vmem, size = 0x2000, scoped, tag = 'input window, operand 0']
    #allocation4 [shape = 's32[2]{0}', space=sflag, size = 0x8, scoped, tag = 'scoped memory for tpu_custom_call.1']
    #allocation5 [shape = 'u8[16384]{0}', space=vmem, size = 0x4000, scoped, tag = 'input window, operand 1, single buffered']
    #allocation6 [shape = 's32[1]{0}', space=sflag, size = 0x4, scoped, tag = 'scoped memory for tpu_custom_call.1']
    %12 = vsyncpa [#allocation4], 0
    %s13 = scalar_lea.sflag [#allocation4], 1
    %14 = vsyncpa %s13, 0
    %15 = vsyncpa [#allocation6], 0
    loop: start=0, step=1, limit=5
    $region2: #{tpu_custom_call.1} parent=1 // loop_pre_header
      _
    $region3: #{tpu_custom_call.1} parent=1 // loop_header
      %s17 = sphi 0, %s21
      %p18 = scmp.ge.s32.totalorder %s17, 5
      %s27 = sphi 0, %s29
      %s30 = sphi 0, %s27
      %s31 = sphi 0, %s30
      %s47 = sphi 0, %s31
      %s51 = sphi 0, %s51
      %s53 = sphi 0, %s51
      %s54 = sphi 0, %s53
      %s68 = sphi 0, %s54
      %s72 = sphi 0, %s72
      %s74 = sphi 0, %s72
      %s75 = sphi 0, %s74
      %s89 = sphi 0, %s75
      %s93 = sphi 0, %s93
      %s95 = sphi 0, %s93
      %s96 = sphi 0, %s95
      %s110 = sphi 0, %s96
      %s114 = sphi 0, %s114
      %s116 = sphi 0, %s114
      %s117 = sphi 0, %s116
      %s131 = sphi 0, %s117
      %s137 = sphi 0, %s139
      %s140 = sphi 0, %s137
      %s141 = sphi 0, %s140
      %s157 = sphi 0, %s141
    $region4: #{tpu_custom_call.1} parent=1 // loop_header_branch
      %20 = sbr.rel (%p18) target = $region8
    $region5: #{tpu_custom_call.1} parent=1 // loop_body
      %s22 = ssub.s32 %s17, 1
      %s23 = ssub.s32 %s17, 2
      %s24 = sadd.s32 %s17, 1
      %s25 = ssub.s32 %s17, %s24
      %p26 = scmp.eq.s32.totalorder %s25, 0
      %s28 = sadd.s32 %s27, 1
      %s29 = scalar_select %p26, %s27, %s28
      %p32 = pneg %p26
      %p33 = scmp.eq.s32.totalorder %s17, 2
      %p34 = por %p32, %p33
      %p35 = scmp.ne.s32.totalorder %s27, %s30
      %p36 = scmp.eq.s32.totalorder %s17, 0
      %p37 = por %p35, %p36
      %p38 = scmp.ne.s32.totalorder %s27, %s30
      %p39 = scmp.eq.s32.totalorder %s22, 2
      %p40 = por %p38, %p39
      %p41 = scmp.ne.s32.totalorder %s30, %s31
      %p42 = scmp.eq.s32.totalorder %s22, 0
      %p43 = por %p41, %p42
      %p44 = scmp.ne.s32.totalorder %s30, %s31
      %p45 = scmp.eq.s32.totalorder %s23, 2
      %p46 = por %p44, %p45
      %p48 = scmp.ne.s32.totalorder %s31, %s47
      %p49 = scmp.eq.s32.totalorder %s23, 0
      %p50 = por %p48, %p49
      %s52 = sadd.s32 %s51, 1
      %p55 = scmp.eq.s32.totalorder %s17, 2
      %p56 = scmp.ne.s32.totalorder %s51, %s53
      %p57 = scmp.eq.s32.totalorder %s17, 0
      %p58 = por %p56, %p57
      %p59 = scmp.ne.s32.totalorder %s51, %s53
      %p60 = scmp.eq.s32.totalorder %s22, 2
      %p61 = por %p59, %p60
      %p62 = scmp.ne.s32.totalorder %s53, %s54
      %p63 = scmp.eq.s32.totalorder %s22, 0
      %p64 = por %p62, %p63
      %p65 = scmp.ne.s32.totalorder %s53, %s54
      %p66 = scmp.eq.s32.totalorder %s23, 2
      %p67 = por %p65, %p66
      %p69 = scmp.ne.s32.totalorder %s54, %s68
      %p70 = scmp.eq.s32.totalorder %s23, 0
      %p71 = por %p69, %p70
      %s73 = sadd.s32 %s72, 1
      %p76 = scmp.eq.s32.totalorder %s17, 2
      %p77 = scmp.ne.s32.totalorder %s72, %s74
      %p78 = scmp.eq.s32.totalorder %s17, 0
      %p79 = por %p77, %p78
      %p80 = scmp.ne.s32.totalorder %s72, %s74
      %p81 = scmp.eq.s32.totalorder %s22, 2
      %p82 = por %p80, %p81
      %p83 = scmp.ne.s32.totalorder %s74, %s75
      %p84 = scmp.eq.s32.totalorder %s22, 0
      %p85 = por %p83, %p84
      %p86 = scmp.ne.s32.totalorder %s74, %s75
      %p87 = scmp.eq.s32.totalorder %s23, 2
      %p88 = por %p86, %p87
      %p90 = scmp.ne.s32.totalorder %s75, %s89
      %p91 = scmp.eq.s32.totalorder %s23, 0
      %p92 = por %p90, %p91
      %s94 = sadd.s32 %s93, 1
      %p97 = scmp.eq.s32.totalorder %s17, 2
      %p98 = scmp.ne.s32.totalorder %s93, %s95
      %p99 = scmp.eq.s32.totalorder %s17, 0
      %p100 = por %p98, %p99
      %p101 = scmp.ne.s32.totalorder %s93, %s95
      %p102 = scmp.eq.s32.totalorder %s22, 2
      %p103 = por %p101, %p102
      %p104 = scmp.ne.s32.totalorder %s95, %s96
      %p105 = scmp.eq.s32.totalorder %s22, 0
      %p106 = por %p104, %p105
      %p107 = scmp.ne.s32.totalorder %s95, %s96
      %p108 = scmp.eq.s32.totalorder %s23, 2
      %p109 = por %p107, %p108
      %p111 = scmp.ne.s32.totalorder %s96, %s110
      %p112 = scmp.eq.s32.totalorder %s23, 0
      %p113 = por %p111, %p112
      %s115 = sadd.s32 %s114, 1
      %p118 = scmp.eq.s32.totalorder %s17, 2
      %p119 = scmp.ne.s32.totalorder %s114, %s116
      %p120 = scmp.eq.s32.totalorder %s17, 0
      %p121 = por %p119, %p120
      %p122 = scmp.ne.s32.totalorder %s114, %s116
      %p123 = scmp.eq.s32.totalorder %s22, 2
      %p124 = por %p122, %p123
      %p125 = scmp.ne.s32.totalorder %s116, %s117
      %p126 = scmp.eq.s32.totalorder %s22, 0
      %p127 = por %p125, %p126
      %p128 = scmp.ne.s32.totalorder %s116, %s117
      %p129 = scmp.eq.s32.totalorder %s23, 2
      %p130 = por %p128, %p129
      %p132 = scmp.ne.s32.totalorder %s117, %s131
      %p133 = scmp.eq.s32.totalorder %s23, 0
      %p134 = por %p132, %p133
      %s135 = ssub.s32 %s17, %s24
      %p136 = scmp.eq.s32.totalorder %s135, 0
      %s138 = sadd.s32 %s137, 1
      %s139 = scalar_select %p136, %s137, %s138
      %p142 = pneg %p136
      %p143 = scmp.eq.s32.totalorder %s17, 2
      %p144 = por %p142, %p143
      %p145 = scmp.ne.s32.totalorder %s137, %s140
      %p146 = scmp.eq.s32.totalorder %s17, 0
      %p147 = por %p145, %p146
      %p148 = scmp.ne.s32.totalorder %s137, %s140
      %p149 = scmp.eq.s32.totalorder %s22, 2
      %p150 = por %p148, %p149
      %p151 = scmp.ne.s32.totalorder %s140, %s141
      %p152 = scmp.eq.s32.totalorder %s22, 0
      %p153 = por %p151, %p152
      %p154 = scmp.ne.s32.totalorder %s140, %s141
      %p155 = scmp.eq.s32.totalorder %s23, 2
      %p156 = por %p154, %p155
      %p158 = scmp.ne.s32.totalorder %s141, %s157
      %p159 = scmp.eq.s32.totalorder %s23, 0
      %p160 = por %p158, %p159
      %p161 = scmp.le.s32.totalorder 1, %s17
      %p162 = scmp.lt.s32.totalorder %s17, 4
      %p163 = pnand %p161, %p162
      %p164 = pneg %p163
      // Predicated region
      $region9: #{tpu_custom_call.1} parent=5 // pred_check
        _
      $region10: #{tpu_custom_call.1} parent=5 // pred_check_branch
        %166 = sbr.rel (%p163) target = $region12
      $region11: #{tpu_custom_call.1} parent=5 // pred_region
        %s167 = ssub.s32 %s17, 1
        // Predicated region
        $region13: #{tpu_custom_call.1} parent=11 // pred_check
          %p168 = pneg %p64
        $region14: #{tpu_custom_call.1} parent=11 // pred_check_branch
          %170 = sbr.rel (%p168) target = $region16
        $region15: #{tpu_custom_call.1} parent=11 // pred_region
          %s172 = ssub.s32 512, 512
          %173 = vsyncadd [#allocation6], %s172
          %s174 = sshll.u32 [#allocation5], 4
          %s175 = int_to_ptr.vmem [resolvable:$true] %s174
          %180 = dma.hbm_to_vmem [thread:$0]  %s1, 512, %s175, [#allocation6], 128, 128, 8
        $region16: #{tpu_custom_call.1} parent=11 // pred_fallthru
          _
        // Predicated region
        $region17: #{tpu_custom_call.1} parent=11 // pred_check
          %p181 = pneg %p85
        $region18: #{tpu_custom_call.1} parent=11 // pred_check_branch
          %183 = sbr.rel (%p181) target = $region20
        $region19: #{tpu_custom_call.1} parent=11 // pred_region
          _
        $region20: #{tpu_custom_call.1} parent=11 // pred_fallthru
          _
        // Predicated region
        $region21: #{tpu_custom_call.1} parent=11 // pred_check
          %p184 = pneg %p106
        $region22: #{tpu_custom_call.1} parent=11 // pred_check_branch
          %186 = sbr.rel (%p184) target = $region24
        $region23: #{tpu_custom_call.1} parent=11 // pred_region
          _
        $region24: #{tpu_custom_call.1} parent=11 // pred_fallthru
          _
        // Predicated region
        $region25: #{tpu_custom_call.1} parent=11 // pred_check
          %p187 = pneg %p127
        $region26: #{tpu_custom_call.1} parent=11 // pred_check_branch
          %189 = sbr.rel (%p187) target = $region28
        $region27: #{tpu_custom_call.1} parent=11 // pred_region
          _
        $region28: #{tpu_custom_call.1} parent=11 // pred_fallthru
          _
      $region12: #{tpu_custom_call.1} parent=5 // pred_fallthru
        _
      %p190 = scmp.lt.s32.totalorder %s17, 3
      // Predicated region
      $region29: #{tpu_custom_call.1} parent=5 // pred_check
        %p191 = pneg %p190
      $region30: #{tpu_custom_call.1} parent=5 // pred_check_branch
        %193 = sbr.rel (%p191) target = $region32
      $region31: #{tpu_custom_call.1} parent=5 // pred_region
        // Predicated region
        $region33: #{tpu_custom_call.1} parent=31 // pred_check
          %p194 = pneg %p37
        $region34: #{tpu_custom_call.1} parent=31 // pred_check_branch
          %196 = sbr.rel (%p194) target = $region36
        $region35: #{tpu_custom_call.1} parent=31 // pred_region
          %s197 = sand.u32 %s27, 1
          %s198 = scalar_lea.sflag [#allocation4], %s197
          %s199 = sand.u32 %s27, 1
          %s200 = smul.addr %s199, 8
          %s201 = scalar_lea.vmem [#allocation3], %s200
          %s203 = ssub.s32 128, 128
          %204 = vsyncadd %s198, %s203
          %s205 = smul.addr %s17, 128
          %s206 = scalar_lea.hbm %s0, %s205
          %s208 = sshll.u32 %s201, 4
          %s209 = int_to_ptr.vmem [resolvable:$true] %s208
          %211 = dma.hbm_to_vmem [thread:$0]  %s206, 128, %s209, %s198
        $region36: #{tpu_custom_call.1} parent=31 // pred_fallthru
          _
      $region32: #{tpu_custom_call.1} parent=5 // pred_fallthru
        _
      %p212 = scmp.le.s32.totalorder 1, %s17
      %p213 = scmp.lt.s32.totalorder %s17, 4
      %p214 = pnand %p212, %p213
      %p215 = pneg %p214
      // Predicated region
      $region37: #{tpu_custom_call.1} parent=5 // pred_check
        _
      $region38: #{tpu_custom_call.1} parent=5 // pred_check_branch
        %217 = sbr.rel (%p214) target = $region40
      $region39: #{tpu_custom_call.1} parent=5 // pred_region
        %s218 = ssub.s32 %s17, 1
        %s219 = sand.u32 %s30, 1
        %s220 = scalar_lea.sflag [#allocation4], %s219
        %s221 = sand.u32 %s30, 1
        %s222 = smul.addr %s221, 8
        %s223 = scalar_lea.vmem [#allocation3], %s222
        // Predicated region
        $region41: #{tpu_custom_call.1} parent=39 // pred_check
          %p224 = pneg %p43
        $region42: #{tpu_custom_call.1} parent=39 // pred_check_branch
          %226 = sbr.rel (%p224) target = $region44
        $region43: #{tpu_custom_call.1} parent=39 // pred_region
          %227 = dma.done %s220, 128
        $region44: #{tpu_custom_call.1} parent=39 // pred_fallthru
          _
        // Predicated region
        $region45: #{tpu_custom_call.1} parent=39 // pred_check
          %p228 = pneg %p64
        $region46: #{tpu_custom_call.1} parent=39 // pred_check_branch
          %230 = sbr.rel (%p228) target = $region48
        $region47: #{tpu_custom_call.1} parent=39 // pred_region
          %231 = dma.done [#allocation6], 512
        $region48: #{tpu_custom_call.1} parent=39 // pred_fallthru
          _
        %s232 = sand.u32 %s30, 1
        %s233 = scalar_lea.sflag [#allocation4], %s232
        %s234 = sand.u32 %s30, 1
        %s235 = smul.addr %s234, 8
        %s236 = scalar_lea.vmem [#allocation3], %s235
        %p237 = pneg %p43
        %p238 = pneg %p40
        %p239 = pneg %p64
        %p240 = pneg %p61
        %p241 = pneg %p85
        %p242 = pneg %p82
        %p243 = pneg %p106
        %p244 = pneg %p103
        %p245 = pneg %p127
        %p246 = pneg %p124
        %p247 = pneg %p153
        %p248 = pneg %p150
        %p249 = scmp.lt.s32.totalorder %s22, 2
        %s250 = scalar_select %p249, %s22, 2
        %s251 = smul.addr %s250, 8
        %s252 = scalar_lea.vmem %s5, %s251
        %p253 = scmp.lt.s32.totalorder %s22, 2
        %s254 = scalar_select %p253, %s22, 2
        %s255 = smul.addr %s254, 8
        %s256 = scalar_lea.vmem %s5, %s255
        %v257 = vld [vmem:[%s223] sm:$0xff]
        %v258 = vld [vmem:[#allocation5] sm:$0xff]
        %v259 = vld [vmem:[#allocation5 + $0x8] sm:$0xff]
        %v260 = vld [vmem:[#allocation5 + $0x10] sm:$0xff]
        %v261 = vld [vmem:[#allocation5 + $0x18] sm:$0xff]
        %v262 = vld [vmem:[%s2] sm:$0x1]
        %v264 = vlaneseq
        %v265 = vshrl.u32 %v264, 7
        %v266 = vsub.s32 0, %v265
        %v267 = vrot.slane %v262, %v266
        %vm269 = vcmask 261120
        %v271 = vsel %vm269, %v257, 0
        %273 = vmatprep.subr.mxu0 0.0
        %274 = vmatpush1.msra.mxu0 %v258
        %275 = vmatprep.subr.mxu0 0.0
        %276 = vmatpush1.msra.mxu0 %v259
        %277 = vmatprep.subr.mxu0 0.0
        %278 = vmatpush1.msra.mxu0 %v260
        %279 = vmatprep.subr.mxu0 0.0
        %280 = vmatpush1.msra.mxu0 %v261
        %281 = vmatprep.subr.mxu0 0.0
        %282 = vmatpush1.msra.mxu0 0.0
        %283 = vmatprep.subr.mxu0 0.0
        %284 = vmatpush1.msra.mxu0 0.0
        %285 = vmatprep.subr.mxu0 0.0
        %286 = vmatpush1.msra.mxu0 0.0
        %287 = vmatprep.subr.mxu0 0.0
        %288 = vmatpush1.msra.mxu0 0.0
        %289 = vmatprep.subr.mxu0 0.0
        %290 = vmatpush1.msra.mxu0 0.0
        %291 = vmatprep.subr.mxu0 0.0
        %292 = vmatpush1.msra.mxu0 0.0
        %293 = vmatprep.subr.mxu0 0.0
        %294 = vmatpush1.msra.mxu0 0.0
        %295 = vmatprep.subr.mxu0 0.0
        %296 = vmatpush1.msra.mxu0 0.0
        %297 = vmatprep.subr.mxu0 0.0
        %298 = vmatpush1.msra.mxu0 0.0
        %299 = vmatprep.subr.mxu0 0.0
        %300 = vmatpush1.msra.mxu0 0.0
        %301 = vmatprep.subr.mxu0 0.0
        %302 = vmatpush1.msra.mxu0 0.0
        %303 = vmatprep.subr.mxu0 0.0
        %304 = vmatpush1.msra.mxu0 0.0
        %305 = vmatprep.subr.mxu0 0.0
        %306 = vmatpush1.msra.mxu0 0.0
        %307 = vmatprep.subr.mxu0 0.0
        %308 = vmatpush1.msra.mxu0 0.0
        %309 = vmatprep.subr.mxu0 0.0
        %310 = vmatpush1.msra.mxu0 0.0
        %311 = vmatprep.subr.mxu0 0.0
        %312 = vmatpush1.msra.mxu0 0.0
        %313 = vmatprep.subr.mxu0 0.0
        %314 = vmatpush1.msra.mxu0 0.0
        %315 = vmatprep.subr.mxu0 0.0
        %316 = vmatpush1.msra.mxu0 0.0
        %317 = vmatprep.subr.mxu0 0.0
        %318 = vmatpush1.msra.mxu0 0.0
        %319 = vmatprep.subr.mxu0 0.0
        %320 = vmatpush1.msra.mxu0 0.0
        %321 = vmatprep.subr.mxu0 0.0
        %322 = vmatpush1.msra.mxu0 0.0
        %323 = vmatprep.subr.mxu0 0.0
        %324 = vmatpush1.msra.mxu0 0.0
        %325 = vmatprep.subr.mxu0 0.0
        %326 = vmatpush1.msra.mxu0 0.0
        %327 = vmatprep.subr.mxu0 0.0
        %328 = vmatpush1.msra.mxu0 0.0
        %329 = vmatprep.subr.mxu0 0.0
        %330 = vmatpush1.msra.mxu0 0.0
        %331 = vmatprep.subr.mxu0 0.0
        %332 = vmatpush1.msra.mxu0 0.0
        %333 = vmatprep.subr.mxu0 0.0
        %334 = vmatpush1.msra.mxu0 0.0
        %335 = vmatprep.subr.mxu0 0.0
        %336 = vmatpush1.msra.mxu0 0.0
        %337 = vmatprep.mubr.f32.mxu0 0.0
        %338 = vmatmul.mubr.f32.gmra.mrb[0].mxu0 %v271
        %v339 = vpop.f32.mrb[0].mxu0
        %v340 = vadd.f32 %v267, %v339
        %v341 = vpop.f32.mrb[0].mxu0
        %342 = vdwg.mxu0
        %v343 = vmax.f32 %v340, 0.0
        %v344 = vld [vmem:[%s3] sm:$0x1]
        %v346 = vlaneseq
        %v347 = vshrl.u32 %v346, 7
        %v348 = vsub.s32 0, %v347
        %v349 = vrot.slane %v344, %v348
        %v351 = vmul.f32 %v343, %v349
        %352 = vadd.xlane.f32.xlu0 %v351
        %v353 = vpop.xlane.xlu0 %352
        %v354 = vld [vmem:[#allocation2] sm:$0x1]
        %v356 = vlaneseq
        %v357 = vshrl.u32 %v356, 7
        %v358 = vsub.s32 0, %v357
        %v359 = vrot.slane %v354, %v358
        %v361 = vadd.f32 %v353, %v359
        %v362 = vand.u32 2147483647, %v361
        %v363 = vsub.f32 0.0, %v362
        %v364 = vmul.f32 %v363, 1.442695
        %v365 = vpow.pop %v364
        %vm366 = vcmp.ge.f32.partialorder %v361, 0.0
        %v367 = vsel %vm366, 1.0, %v365
        %v368 = vadd.f32 %v365, 1.0
        %v369 = vrcp.pop %v368
        %v370 = vmul.f32 %v367, %v369
        %vm371 = vcmask 7168
        %372 = vst.msk [vmem:[%s256] sm:$0xff] %vm371, %v370
        %p373 = scmp.lt.s32.totalorder %s22, 2
        %s374 = scalar_select %p373, %s22, 2
        %s375 = smul.addr %s374, 8
        %s376 = scalar_lea.vmem %s5, %s375
        // Predicated region
        $region49: #{tpu_custom_call.1} parent=39 // pred_check
          %p377 = pneg %p150
        $region50: #{tpu_custom_call.1} parent=39 // pred_check_branch
          %379 = sbr.rel (%p377) target = $region52
        $region51: #{tpu_custom_call.1} parent=39 // pred_region
          _
        $region52: #{tpu_custom_call.1} parent=39 // pred_fallthru
          _
      $region40: #{tpu_custom_call.1} parent=5 // pred_fallthru
        _
      %p380 = scmp.le.s32.totalorder 2, %s17
      // Predicated region
      $region53: #{tpu_custom_call.1} parent=5 // pred_check
        %p381 = pneg %p380
      $region54: #{tpu_custom_call.1} parent=5 // pred_check_branch
        %383 = sbr.rel (%p381) target = $region56
      $region55: #{tpu_custom_call.1} parent=5 // pred_region
        %s384 = ssub.s32 %s17, 2
        // Predicated region
        $region57: #{tpu_custom_call.1} parent=55 // pred_check
          %p385 = pneg %p156
        $region58: #{tpu_custom_call.1} parent=55 // pred_check_branch
          %387 = sbr.rel (%p385) target = $region60
        $region59: #{tpu_custom_call.1} parent=55 // pred_region
          %p388 = scmp.lt.s32.totalorder %s23, 2
          %s389 = scalar_select %p388, %s23, 2
          %s390 = smul.addr %s389, 8
          %s391 = scalar_lea.vmem %s5, %s390
        $region60: #{tpu_custom_call.1} parent=55 // pred_fallthru
          _
      $region56: #{tpu_custom_call.1} parent=5 // pred_fallthru
        _
    $region6: #{tpu_custom_call.1} parent=1 // loop_footer
      %s21 = sadd.s32 1, %s17
    $region7: #{tpu_custom_call.1} parent=1 // loop_footer_branch
      %16 = sbr.rel target = $region3
    $region8: #{tpu_custom_call.1} parent=1 // loop_exit
      _
    %392 = vsyncpa [#allocation4], 1
    %s393 = scalar_lea.sflag [#allocation4], 1
    %394 = vsyncpa %s393, 1
    %395 = vsyncpa [#allocation6], 1

</llo_original>
